<compile_context>
chip_gen: v7x
topology: tpu7x:2x2x1
jax: 0.10.0
libtpu: 0.0.40
codegen_flags: <defaults>
</compile_context>

<pallas_src>
import functools
import math

import jax
import jax.numpy as jnp
from jax.experimental import pallas as pl
from jax.experimental.pallas import tpu as pltpu


def _round_up(x, m):
    return ((x + m - 1) // m) * m


# --------------------------------------------------------------------------
# Kernels
# --------------------------------------------------------------------------
def _mlp_kernel_acc(x_ref, wu_ref, bu_ref, wd_ref, bd_ref, o_ref, acc_ref):
    """Variant with an f32 VMEM accumulator (used when out dtype != f32)."""
    k = pl.program_id(1)

    @pl.when(k == 0)
    def _init():
        # Fold the down-proj bias (f32) into the accumulator once.
        acc_ref[...] = jnp.broadcast_to(bd_ref[...], acc_ref.shape)

    # up-proj slice for this hidden tile: (tm, D) @ (D, th) -> f32.
    h = jnp.dot(x_ref[...], wu_ref[...], preferred_element_type=jnp.float32)
    h = h + bu_ref[...]  # f32 bias

    # Exact (erf-based) GELU in f32; matches nn.GELU(approximate='none').
    g = (0.5 * h) * (1.0 + jax.lax.erf(h * jnp.float32(0.7071067811865476)))

    # down-proj partial sum: (tm, th) @ (th, D), accumulated in f32 VMEM.
    acc_ref[...] += jnp.dot(g.astype(wd_ref.dtype), wd_ref[...],
                            preferred_element_type=jnp.float32)

    @pl.when(k == pl.num_programs(1) - 1)
    def _finalize():
        o_ref[...] = acc_ref[...].astype(o_ref.dtype)


def _mlp_kernel_f32_out(x_ref, wu_ref, bu_ref, wd_ref, bd_ref, o_ref):
    """Variant for f32 output: accumulate directly into o_ref (no scratch)."""
    k = pl.program_id(1)

    @pl.when(k == 0)
    def _init():
        o_ref[...] = jnp.broadcast_to(bd_ref[...], o_ref.shape)

    h = jnp.dot(x_ref[...], wu_ref[...], preferred_element_type=jnp.float32)
    h = h + bu_ref[...]
    g = (0.5 * h) * (1.0 + jax.lax.erf(h * jnp.float32(0.7071067811865476)))
    o_ref[...] += jnp.dot(g.astype(wd_ref.dtype), wd_ref[...],
                          preferred_element_type=jnp.float32)


# --------------------------------------------------------------------------
# Generation-aware tile selection
# --------------------------------------------------------------------------
def _vmem_capacity_bytes():
    try:
        info = pltpu.get_tpu_info()
        cap = getattr(info, "vmem_capacity_bytes", None)
        if cap:
            return int(cap)
    except Exception:
        pass
    # Conservative fallback (v7x per-TC VMEM).
    return 64 * 1024 * 1024


def _select_tiles(M, D, th, compute_dtype, out_dtype, use_acc, block_m=None):
    w_isz = jnp.dtype(compute_dtype).itemsize
    o_isz = jnp.dtype(out_dtype).itemsize
    pack = 8 * max(1, 4 // w_isz)          # 8 sublanes f32, 16 for bf16
    m_cap = _round_up(M, pack)

    cap = _vmem_capacity_bytes()
    budget = int(cap * 0.75)

    def footprint(tm):
        b = 2 * tm * D * w_isz             # x tile (double-buffered)
        b += 2 * D * th * w_isz            # W_up^T tile
        b += 2 * th * D * w_isz            # W_down^T tile
        b += 2 * (th + D) * 4              # f32 biases
        b += 2 * tm * D * o_isz            # output tile
        if use_acc:
            b += tm * D * 4                # f32 accumulator scratch
        return b

    if block_m is not None:
        tm = _round_up(min(block_m, m_cap), pack)
    else:
        tm = 128
        for cand in (1024, 768, 512, 256, 128):
            if footprint(cand) <= budget:
                tm = cand
                break
        tm = _round_up(min(tm, m_cap), pack)

    vmem_limit = int(min(cap * 0.9,
                         max(footprint(tm) + (4 << 20), 32 << 20)))
    return tm, vmem_limit


# --------------------------------------------------------------------------
# One-time parameter prep (model-load time): transpose/cast/pad the weights,
# keep biases in f32.
# --------------------------------------------------------------------------
def prepare_mpt_mlp_params(w_up, b_up, w_down, b_down, *,
                           block_h=512, compute_dtype=jnp.bfloat16):
    """w_up: (H, D), b_up: (H,), w_down: (D, H), b_down: (D,)  [PyTorch]."""
    H, D = w_up.shape
    th = min(block_h, _round_up(H, 128))
    Hp = _round_up(H, th)

    wu_t = jnp.asarray(w_up).T.astype(compute_dtype)        # (D, H)
    wd_t = jnp.asarray(w_down).T.astype(compute_dtype)      # (H, D)
    bu = jnp.asarray(b_up, dtype=jnp.float32).reshape(1, H)
    bd = jnp.asarray(b_down, dtype=jnp.float32).reshape(1, D)

    if Hp != H:
        # Zero padding is exact: x @ 0 + 0 bias = 0, GELU(0) = 0, and the
        # padded W_down rows are zero so they contribute nothing.
        wu_t = jnp.pad(wu_t, ((0, 0), (0, Hp - H)))
        bu = jnp.pad(bu, ((0, 0), (0, Hp - H)))
        wd_t = jnp.pad(wd_t, ((0, Hp - H), (0, 0)))

    return {"wu_t": wu_t, "bu": bu, "wd_t": wd_t, "bd": bd, "th": th}


# --------------------------------------------------------------------------
# Per-call path (jit'd, only x-side padding/cast inside).
# --------------------------------------------------------------------------
@functools.partial(jax.jit, static_argnames=("tm", "th", "vmem_limit"))
def _mpt_mlp_jit(x, wu_t, bu, wd_t, bd, *, tm, th, vmem_limit):
    orig_shape = x.shape
    D = orig_shape[-1]
    M = x.size // D
    Hp = wu_t.shape[1]
    out_dtype = x.dtype
    compute_dtype = wu_t.dtype
    use_acc = jnp.dtype(out_dtype) != jnp.dtype(jnp.float32)

    x2d = x.reshape(M, D).astype(compute_dtype)
    Mp = _round_up(M, tm)
    if Mp != M:
        x2d = jnp.pad(x2d, ((0, Mp - M), (0, 0)))

    grid = (Mp // tm, Hp // th)
    n_m_tiles = Mp // tm

    w_isz = jnp.dtype(compute_dtype).itemsize
    o_isz = jnp.dtype(out_dtype).itemsize
    cost = pl.CostEstimate(
        flops=4 * Mp * D * Hp,
        transcendentals=Mp * Hp,
        bytes_accessed=(Mp * D * w_isz
                        + n_m_tiles * (2 * D * Hp * w_isz + Hp * 4 + D * 4)
                        + Mp * D * o_isz))

    if use_acc:
        kernel = _mlp_kernel_acc
        scratch_shapes = [pltpu.VMEM((tm, D), jnp.float32)]
    else:
        kernel = _mlp_kernel_f32_out
        scratch_shapes = []

    out2d = pl.pallas_call(
        kernel,
        out_shape=jax.ShapeDtypeStruct((Mp, D), out_dtype),
        grid_spec=pltpu.PrefetchScalarGridSpec(
            num_scalar_prefetch=0,
            grid=grid,
            in_specs=[
                pl.BlockSpec((tm, D), lambda i, k: (i, 0)),   # x rows
                pl.BlockSpec((D, th), lambda i, k: (0, k)),   # W_up^T tile
                pl.BlockSpec((1, th), lambda i, k: (0, k)),   # b_up (f32)
                pl.BlockSpec((th, D), lambda i, k: (k, 0)),   # W_down^T tile
                pl.BlockSpec((1, D), lambda i, k: (0, 0)),    # b_down (f32)
            ],
            out_specs=pl.BlockSpec((tm, D), lambda i, k: (i, 0)),
            scratch_shapes=scratch_shapes,
        ),
        compiler_params=pltpu.CompilerParams(
            dimension_semantics=("parallel", "arbitrary"),
            vmem_limit_bytes=vmem_limit),
        cost_estimate=cost,
    )(x2d, wu_t, bu, wd_t, bd)

    return out2d[:M].reshape(orig_shape)


def mpt_mlp(x, params, *, block_m=None):
    """MPT MLP forward with pre-prepared params (see prepare_mpt_mlp_params)."""
    D = x.shape[-1]
    M = math.prod(x.shape[:-1]) if x.ndim > 1 else 1
    th = params["th"]
    compute_dtype = params["wu_t"].dtype
    out_dtype = x.dtype
    use_acc = jnp.dtype(out_dtype) != jnp.dtype(jnp.float32)
    tm, vmem_limit = _select_tiles(M, D, th, compute_dtype, out_dtype,
                                   use_acc, block_m)
    return _mpt_mlp_jit(x, params["wu_t"], params["bu"],
                        params["wd_t"], params["bd"],
                        tm=tm, th=th, vmem_limit=vmem_limit)


# TODO(synk): v7x small-M decode could additionally use a VMEM_SHARED/CMEM
# weight tile or fp8 weights so both TCs share one weight stream; not needed
# for correctness here.


if __name__ == "__main__":
    # Small shapes: batch=2, seq=8, d_model=32, expansion_ratio=4 -> H=128
    B, S, D = 2, 8, 32
    EXP = 4
    H = EXP * D

    key = jax.random.PRNGKey(0)
    kx, k1, k2, k3, k4 = jax.random.split(key, 5)

    x = jax.random.normal(kx, (B, S, D), dtype=jnp.float32)

    # PyTorch-style parameter shapes: weight (out, in), bias (out,)
    lim_up = 1.0 / jnp.sqrt(jnp.float32(D))
    lim_dn = 1.0 / jnp.sqrt(jnp.float32(H))
    w_up = jax.random.uniform(k1, (H, D), jnp.float32, -lim_up, lim_up)
    b_up = jax.random.uniform(k2, (H,), jnp.float32, -lim_up, lim_up)
    w_down = jax.random.uniform(k3, (D, H), jnp.float32, -lim_dn, lim_dn)
    b_down = jax.random.uniform(k4, (D,), jnp.float32, -lim_dn, lim_dn)

    # Plain-JAX f32 reference (same math as the PyTorch forward).
    def gelu_exact(v):
        return 0.5 * v * (1.0 + jax.lax.erf(v / jnp.sqrt(jnp.float32(2.0))))

    ref = gelu_exact(x @ w_up.T + b_up) @ w_down.T + b_down

    # 1) Strict structural check with an all-f32 compute path.
    params_f32 = prepare_mpt_mlp_params(w_up, b_up, w_down, b_down,
                                        compute_dtype=jnp.float32)
    out_f32 = jax.block_until_ready(mpt_mlp(x, params_f32))
    assert out_f32.shape == (B, S, D)
    assert jnp.allclose(out_f32, ref, atol=1e-5, rtol=1e-5), (
        float(jnp.max(jnp.abs(out_f32 - ref))))

    # 2) Production path: bf16 MXU inputs, f32 biases + f32 accumulation.
    params_bf16 = prepare_mpt_mlp_params(w_up, b_up, w_down, b_down,
                                         compute_dtype=jnp.bfloat16)
    out_bf16 = jax.block_until_ready(mpt_mlp(x, params_bf16))
    assert out_bf16.shape == (B, S, D)
    assert jnp.allclose(out_bf16, ref, atol=3e-2, rtol=3e-2), (
        float(jnp.max(jnp.abs(out_bf16 - ref))))

    print("KERNEL_OK")
</pallas_src>

<mosaic_0001>
module attributes {stable_mosaic.version = 11 : i64} {
  func.func @_mlp_kernel_f32_out(%arg0: i32, %arg1: i32, %arg2: memref<16x32xf32, #tpu.memory_space<vmem>>, %arg3: memref<32x128xf32, #tpu.memory_space<vmem>>, %arg4: memref<1x128xf32, #tpu.memory_space<vmem>>, %arg5: memref<128x32xf32, #tpu.memory_space<vmem>>, %arg6: memref<1x32xf32, #tpu.memory_space<vmem>>, %arg7: memref<16x32xf32, #tpu.memory_space<vmem>>) attributes {dimension_semantics = [#tpu.dimension_semantics<parallel>, #tpu.dimension_semantics<arbitrary>], iteration_bounds = array<i64: 1, 1>, scalar_prefetch = 0 : i64, scratch_operands = 0 : i64, tpu.core_type = #tpu.core_type<tc>, window_params = [{transform_indices = @transform_0, window_bounds = array<i64: 16, 32>}, {transform_indices = @transform_1, window_bounds = array<i64: 32, 128>}, {transform_indices = @transform_2, window_bounds = array<i64: 1, 128>}, {transform_indices = @transform_3, window_bounds = array<i64: 128, 32>}, {pipeline_mode = #tpu.pipeline_mode<synchronous>, transform_indices = @transform_4, window_bounds = array<i64: 1, 32>}, {transform_indices = @transform_5, window_bounds = array<i64: 16, 32>}]} {
    %c0_i32 = arith.constant 0 : i32
    %0 = arith.cmpi eq, %arg1, %c0_i32 : i32
    %1 = arith.extui %0 : i1 to i32
    %c0_i32_0 = arith.constant 0 : i32
    %2 = arith.cmpi ne, %1, %c0_i32_0 : i32
    scf.if %2 {
      %c0_16 = arith.constant 0 : index
      %c0_17 = arith.constant 0 : index
      %22 = vector.load %arg6[%c0_16, %c0_17] : memref<1x32xf32, #tpu.memory_space<vmem>>, vector<1x32xf32>
      %23 = vector.shape_cast %22 : vector<1x32xf32> to vector<1x32xf32>
      %24 = vector.broadcast %23 : vector<1x32xf32> to vector<16x32xf32>
      %c0_18 = arith.constant 0 : index
      %c0_19 = arith.constant 0 : index
      %25 = vector.load %arg7[%c0_18, %c0_19] : memref<16x32xf32, #tpu.memory_space<vmem>>, vector<16x32xf32>
      tpu.vector_store %arg7[%c0_18, %c0_19], %24 {strides = array<i32>} : memref<16x32xf32, #tpu.memory_space<vmem>>, vector<16x32xf32>,
    } else {
    }
    %c0 = arith.constant 0 : index
    %c0_1 = arith.constant 0 : index
    %3 = vector.load %arg2[%c0, %c0_1] : memref<16x32xf32, #tpu.memory_space<vmem>>, vector<16x32xf32>
    %c0_2 = arith.constant 0 : index
    %c0_3 = arith.constant 0 : index
    %4 = vector.load %arg3[%c0_2, %c0_3] : memref<32x128xf32, #tpu.memory_space<vmem>>, vector<32x128xf32>
    %cst = arith.constant dense<0.000000e+00> : vector<16x128xf32>
    %5 = tpu.matmul %3, %4, %cst {dimension_numbers = #tpu.dot_dimension_numbers<[1], [0], [0], [1], [0, 0, 1, 1], [], []>} : vector<16x32xf32>, vector<32x128xf32>, vector<16x128xf32> -> vector<16x128xf32>
    %c0_4 = arith.constant 0 : index
    %c0_5 = arith.constant 0 : index
    %6 = vector.load %arg4[%c0_4, %c0_5] : memref<1x128xf32, #tpu.memory_space<vmem>>, vector<1x128xf32>
    %7 = vector.broadcast %6 : vector<1x128xf32> to vector<16x128xf32>
    %8 = arith.addf %5, %7 : vector<16x128xf32>
    %cst_6 = arith.constant 5.000000e-01 : f32
    %9 = vector.broadcast %cst_6 : f32 to vector<16x128xf32>
    %10 = arith.mulf %9, %8 : vector<16x128xf32>
    %cst_7 = arith.constant 0.707106769 : f32
    %11 = vector.broadcast %cst_7 : f32 to vector<16x128xf32>
    %12 = arith.mulf %8, %11 : vector<16x128xf32>
    %13 = math.erf %12 : vector<16x128xf32>
    %cst_8 = arith.constant 1.000000e+00 : f32
    %14 = vector.broadcast %cst_8 : f32 to vector<16x128xf32>
    %15 = arith.addf %14, %13 : vector<16x128xf32>
    %16 = arith.mulf %10, %15 : vector<16x128xf32>
    %c0_9 = arith.constant 0 : index
    %c0_10 = arith.constant 0 : index
    %17 = vector.load %arg7[%c0_9, %c0_10] : memref<16x32xf32, #tpu.memory_space<vmem>>, vector<16x32xf32>
    %c0_11 = arith.constant 0 : index
    %c0_12 = arith.constant 0 : index
    %18 = vector.load %arg5[%c0_11, %c0_12] : memref<128x32xf32, #tpu.memory_space<vmem>>, vector<128x32xf32>
    %cst_13 = arith.constant dense<0.000000e+00> : vector<16x32xf32>
    %19 = tpu.matmul %16, %18, %cst_13 {dimension_numbers = #tpu.dot_dimension_numbers<[1], [0], [0], [1], [0, 0, 1, 1], [], []>} : vector<16x128xf32>, vector<128x32xf32>, vector<16x32xf32> -> vector<16x32xf32>
    %20 = arith.addf %17, %19 : vector<16x32xf32>
    %c0_14 = arith.constant 0 : index
    %c0_15 = arith.constant 0 : index
    %21 = vector.load %arg7[%c0_14, %c0_15] : memref<16x32xf32, #tpu.memory_space<vmem>>, vector<16x32xf32>
    tpu.vector_store %arg7[%c0_14, %c0_15], %20 {strides = array<i32>} : memref<16x32xf32, #tpu.memory_space<vmem>>, vector<16x32xf32>,
    return
  }
  func.func @transform_0(%arg0: i32, %arg1: i32) -> (i32, i32) {
    %c0_i32 = arith.constant 0 : i32
    %c0_i32_0 = arith.constant 0 : i32
    return %arg0, %c0_i32 : i32, i32
  }
  func.func @transform_1(%arg0: i32, %arg1: i32) -> (i32, i32) {
    %c0_i32 = arith.constant 0 : i32
    %c0_i32_0 = arith.constant 0 : i32
    return %c0_i32, %arg1 : i32, i32
  }
  func.func @transform_2(%arg0: i32, %arg1: i32) -> (i32, i32) {
    %c0_i32 = arith.constant 0 : i32
    %c0_i32_0 = arith.constant 0 : i32
    return %c0_i32, %arg1 : i32, i32
  }
  func.func @transform_3(%arg0: i32, %arg1: i32) -> (i32, i32) {
    %c0_i32 = arith.constant 0 : i32
    %c0_i32_0 = arith.constant 0 : i32
    return %arg1, %c0_i32 : i32, i32
  }
  func.func @transform_4(%arg0: i32, %arg1: i32) -> (i32, i32) {
    %c0_i32 = arith.constant 0 : i32
    %c0_i32_0 = arith.constant 0 : i32
    %c0_i32_1 = arith.constant 0 : i32
    return %c0_i32, %c0_i32_0 : i32, i32
  }
  func.func @transform_5(%arg0: i32, %arg1: i32) -> (i32, i32) {
    %c0_i32 = arith.constant 0 : i32
    %c0_i32_0 = arith.constant 0 : i32
    return %arg0, %c0_i32 : i32, i32
  }
}

</mosaic_0001>

<llo_original>
// kernel: _mpt_mlp_jit.1
$region0: #{_mpt_mlp_jit.1}
  #allocation0 [shape = 'u32[]', space=smem, size = 0x4, offset = 0x4, fixed_abs, tag = 'smem constant byte address 0x4 - core index']
  #allocation1 [shape = 'u32[144,128]{1,0:T(1,128)}', space=vmem, size = 0x12000, scoped, tag = 'internal scratch']
  %s0 = inlined_call_operand.vmem [shape: f32[16,32], index: 0, kind: input, shape index: {}]
  %s1 = inlined_call_operand.vmem [shape: f32[32,128], index: 1, kind: input, shape index: {}]
  %s2 = inlined_call_operand.vmem [shape: f32[1,128], index: 2, kind: input, shape index: {}]
  %s3 = inlined_call_operand.vmem [shape: f32[128,32], index: 3, kind: input, shape index: {}]
  %s4 = inlined_call_operand.vmem [shape: f32[1,32], index: 4, kind: input, shape index: {}]
  %s5 = inlined_call_operand.hbm [shape: f32[16,32], index: 5, kind: output, shape index: {}]
  %s6 = sld [smem:[#allocation0]]
  $region34: #{_mpt_mlp_jit.1} parent=0
    _
  %s8 = ssub.s32 1, %s6
  %s9 = scalar_select 0, %s8, %s6
  $region1: #{_mpt_mlp_jit.1} parent=0
    #allocation2 [shape = 'u8[8192]{0}', space=vmem, size = 0x2000, scoped, tag = 'output window, operand 0, single buffered']
    #allocation3 [shape = 's32[1]{0}', space=sflag, size = 0x4, scoped, tag = 'scoped memory for _mpt_mlp_jit.1']
    %10 = vsyncpa [#allocation3], 0
    // Predicated region
    $region2: #{_mpt_mlp_jit.1} parent=1 // pred_check
      _
    $region3: #{_mpt_mlp_jit.1} parent=1 // pred_check_branch
      %12 = sbr.rel (0) target = $region5
    $region4: #{_mpt_mlp_jit.1} parent=1 // pred_region
      _
    $region5: #{_mpt_mlp_jit.1} parent=1 // pred_fallthru
      _
    // Predicated region
    $region6: #{_mpt_mlp_jit.1} parent=1 // pred_check
      _
    $region7: #{_mpt_mlp_jit.1} parent=1 // pred_check_branch
      %14 = sbr.rel (0) target = $region9
    $region8: #{_mpt_mlp_jit.1} parent=1 // pred_region
      _
    $region9: #{_mpt_mlp_jit.1} parent=1 // pred_fallthru
      _
    // Predicated region
    $region10: #{_mpt_mlp_jit.1} parent=1 // pred_check
      _
    $region11: #{_mpt_mlp_jit.1} parent=1 // pred_check_branch
      %16 = sbr.rel (0) target = $region13
    $region12: #{_mpt_mlp_jit.1} parent=1 // pred_region
      _
    $region13: #{_mpt_mlp_jit.1} parent=1 // pred_fallthru
      _
    // Predicated region
    $region14: #{_mpt_mlp_jit.1} parent=1 // pred_check
      _
    $region15: #{_mpt_mlp_jit.1} parent=1 // pred_check_branch
      %18 = sbr.rel (0) target = $region17
    $region16: #{_mpt_mlp_jit.1} parent=1 // pred_region
      _
    $region17: #{_mpt_mlp_jit.1} parent=1 // pred_fallthru
      _
    // Predicated region
    $region18: #{_mpt_mlp_jit.1} parent=1 // pred_check
      _
    $region19: #{_mpt_mlp_jit.1} parent=1 // pred_check_branch
      %20 = sbr.rel (0) target = $region21
    $region20: #{_mpt_mlp_jit.1} parent=1 // pred_region
      _
    $region21: #{_mpt_mlp_jit.1} parent=1 // pred_fallthru
      _
    %p21 = scmp.eq.s32.totalorder 0, 0
    // Predicated region
    $region22: #{_mpt_mlp_jit.1} parent=1 // pred_check
      %p22 = pneg %p21
    $region23: #{_mpt_mlp_jit.1} parent=1 // pred_check_branch
      %24 = sbr.rel (%p22) target = $region25
    $region24: #{_mpt_mlp_jit.1} parent=1 // pred_region
      %v25 = vld [vmem:[%s4] sm:$0x1]
      %v27 = vlaneseq
      %v28 = vshrl.u32 %v27, 7
      %v29 = vsub.s32 0, %v28
      %v30 = vrot.slane %v25, %v29
      %vm32 = vcmask 261120
      %33 = vst.msk [vmem:[#allocation2] sm:$0xff] %vm32, %v30
      %34 = vst.msk [vmem:[#allocation2 + $0x8] sm:$0xff] %vm32, %v30
    $region25: #{_mpt_mlp_jit.1} parent=1 // pred_fallthru
      _
    %v35 = vld [vmem:[%s0] sm:$0xff]
    %v36 = vld [vmem:[%s0 + $0x8] sm:$0xff]
    %v37 = vld [vmem:[%s1] sm:$0xff]
    %v38 = vld [vmem:[%s1 + $0x8] sm:$0xff]
    %v39 = vld [vmem:[%s1 + $0x10] sm:$0xff]
    %v40 = vld [vmem:[%s1 + $0x18] sm:$0xff]
    %v41 = vld [vmem:[%s2] sm:$0x1]
    %v43 = vlaneseq
    %v44 = vshrl.u32 %v43, 7
    %v45 = vsub.s32 0, %v44
    %v46 = vrot.slane %v41, %v45
    %vm48 = vcmask 261120
    %v50 = vsel %vm48, %v35, 0
    %v53 = vsel %vm48, %v36, 0
    %55 = vmatprep.subr.mxu0 0.0
    %56 = vmatpush1.msra.mxu0 %v37
    %57 = vmatprep.subr.mxu0 0.0
    %58 = vmatpush1.msra.mxu0 %v38
    %59 = vmatprep.subr.mxu0 0.0
    %60 = vmatpush1.msra.mxu0 %v39
    %61 = vmatprep.subr.mxu0 0.0
    %62 = vmatpush1.msra.mxu0 %v40
    %63 = vmatprep.subr.mxu0 0.0
    %64 = vmatpush1.msra.mxu0 0.0
    %65 = vmatprep.subr.mxu0 0.0
    %66 = vmatpush1.msra.mxu0 0.0
    %67 = vmatprep.subr.mxu0 0.0
    %68 = vmatpush1.msra.mxu0 0.0
    %69 = vmatprep.subr.mxu0 0.0
    %70 = vmatpush1.msra.mxu0 0.0
    %71 = vmatprep.subr.mxu0 0.0
    %72 = vmatpush1.msra.mxu0 0.0
    %73 = vmatprep.subr.mxu0 0.0
    %74 = vmatpush1.msra.mxu0 0.0
    %75 = vmatprep.subr.mxu0 0.0
    %76 = vmatpush1.msra.mxu0 0.0
    %77 = vmatprep.subr.mxu0 0.0
    %78 = vmatpush1.msra.mxu0 0.0
    %79 = vmatprep.subr.mxu0 0.0
    %80 = vmatpush1.msra.mxu0 0.0
    %81 = vmatprep.subr.mxu0 0.0
    %82 = vmatpush1.msra.mxu0 0.0
    %83 = vmatprep.subr.mxu0 0.0
    %84 = vmatpush1.msra.mxu0 0.0
    %85 = vmatprep.subr.mxu0 0.0
    %86 = vmatpush1.msra.mxu0 0.0
    %87 = vmatprep.subr.mxu0 0.0
    %88 = vmatpush1.msra.mxu0 0.0
    %89 = vmatprep.subr.mxu0 0.0
    %90 = vmatpush1.msra.mxu0 0.0
    %91 = vmatprep.subr.mxu0 0.0
    %92 = vmatpush1.msra.mxu0 0.0
    %93 = vmatprep.subr.mxu0 0.0
    %94 = vmatpush1.msra.mxu0 0.0
    %95 = vmatprep.subr.mxu0 0.0
    %96 = vmatpush1.msra.mxu0 0.0
    %97 = vmatprep.subr.mxu0 0.0
    %98 = vmatpush1.msra.mxu0 0.0
    %99 = vmatprep.subr.mxu0 0.0
    %100 = vmatpush1.msra.mxu0 0.0
    %101 = vmatprep.subr.mxu0 0.0
    %102 = vmatpush1.msra.mxu0 0.0
    %103 = vmatprep.subr.mxu0 0.0
    %104 = vmatpush1.msra.mxu0 0.0
    %105 = vmatprep.subr.mxu0 0.0
    %106 = vmatpush1.msra.mxu0 0.0
    %107 = vmatprep.subr.mxu0 0.0
    %108 = vmatpush1.msra.mxu0 0.0
    %109 = vmatprep.subr.mxu0 0.0
    %110 = vmatpush1.msra.mxu0 0.0
    %111 = vmatprep.subr.mxu0 0.0
    %112 = vmatpush1.msra.mxu0 0.0
    %113 = vmatprep.subr.mxu0 0.0
    %114 = vmatpush1.msra.mxu0 0.0
    %115 = vmatprep.subr.mxu0 0.0
    %116 = vmatpush1.msra.mxu0 0.0
    %117 = vmatprep.subr.mxu0 0.0
    %118 = vmatpush1.msra.mxu0 0.0
    %119 = vmatprep.mubr.f32.mxu0 0.0
    %120 = vmatmul.mubr.f32.gmra.mrb[0].mxu0 %v50
    %v121 = vpop.f32.mrb[0].mxu0
    %v122 = vadd.f32 %v46, %v121
    %v123 = vpop.f32.mrb[0].mxu0
    %124 = vmatprep.mubr.f32.mxu0 0.0
    %125 = vmatmul.mubr.f32.gmra.mrb[0].mxu0 %v53
    %v126 = vpop.f32.mrb[0].mxu0
    %v127 = vadd.f32 %v46, %v126
    %v128 = vpop.f32.mrb[0].mxu0
    %129 = vdwg.mxu0
    %v130 = vmul.f32 %v122, 0.5
    %v131 = vmul.f32 %v127, 0.5
    %v132 = vmul.f32 %v122, 0.70710677
    %v133 = vmul.f32 %v127, 0.70710677
    %v134 = verf.f32.pop %v132
    %v135 = verf.f32.pop %v133
    %v136 = vadd.f32 %v134, 1.0
    %v137 = vadd.f32 %v135, 1.0
    %v138 = vmul.f32 %v130, %v136
    %v139 = vmul.f32 %v131, %v137
    %v140 = vld [vmem:[#allocation2] sm:$0xff]
    %v141 = vld [vmem:[#allocation2 + $0x8] sm:$0xff]
    %v142 = vld [vmem:[%s3] sm:$0xff]
    %v143 = vld [vmem:[%s3 + $0x8] sm:$0xff]
    %v144 = vld [vmem:[%s3 + $0x10] sm:$0xff]
    %v145 = vld [vmem:[%s3 + $0x18] sm:$0xff]
    %v146 = vld [vmem:[%s3 + $0x20] sm:$0xff]
    %v147 = vld [vmem:[%s3 + $0x28] sm:$0xff]
    %v148 = vld [vmem:[%s3 + $0x30] sm:$0xff]
    %v149 = vld [vmem:[%s3 + $0x38] sm:$0xff]
    %v150 = vld [vmem:[%s3 + $0x40] sm:$0xff]
    %v151 = vld [vmem:[%s3 + $0x48] sm:$0xff]
    %v152 = vld [vmem:[%s3 + $0x50] sm:$0xff]
    %v153 = vld [vmem:[%s3 + $0x58] sm:$0xff]
    %v154 = vld [vmem:[%s3 + $0x60] sm:$0xff]
    %v155 = vld [vmem:[%s3 + $0x68] sm:$0xff]
    %v156 = vld [vmem:[%s3 + $0x70] sm:$0xff]
    %v157 = vld [vmem:[%s3 + $0x78] sm:$0xff]
    %158 = vmatprep.subr.mxu0 0.0
    %159 = vmatpush1.msra.mxu0 %v142
    %160 = vmatprep.subr.mxu0 0.0
    %161 = vmatpush1.msra.mxu0 %v143
    %162 = vmatprep.subr.mxu0 0.0
    %163 = vmatpush1.msra.mxu0 %v144
    %164 = vmatprep.subr.mxu0 0.0
    %165 = vmatpush1.msra.mxu0 %v145
    %166 = vmatprep.subr.mxu0 0.0
    %167 = vmatpush1.msra.mxu0 %v146
    %168 = vmatprep.subr.mxu0 0.0
    %169 = vmatpush1.msra.mxu0 %v147
    %170 = vmatprep.subr.mxu0 0.0
    %171 = vmatpush1.msra.mxu0 %v148
    %172 = vmatprep.subr.mxu0 0.0
    %173 = vmatpush1.msra.mxu0 %v149
    %174 = vmatprep.subr.mxu0 0.0
    %175 = vmatpush1.msra.mxu0 %v150
    %176 = vmatprep.subr.mxu0 0.0
    %177 = vmatpush1.msra.mxu0 %v151
    %178 = vmatprep.subr.mxu0 0.0
    %179 = vmatpush1.msra.mxu0 %v152
    %180 = vmatprep.subr.mxu0 0.0
    %181 = vmatpush1.msra.mxu0 %v153
    %182 = vmatprep.subr.mxu0 0.0
    %183 = vmatpush1.msra.mxu0 %v154
    %184 = vmatprep.subr.mxu0 0.0
    %185 = vmatpush1.msra.mxu0 %v155
    %186 = vmatprep.subr.mxu0 0.0
    %187 = vmatpush1.msra.mxu0 %v156
    %188 = vmatprep.subr.mxu0 0.0
    %189 = vmatpush1.msra.mxu0 %v157
    %190 = vmatprep.subr.mxu0 0.0
    %191 = vmatpush1.msra.mxu0 0.0
    %192 = vmatprep.subr.mxu0 0.0
    %193 = vmatpush1.msra.mxu0 0.0
    %194 = vmatprep.subr.mxu0 0.0
    %195 = vmatpush1.msra.mxu0 0.0
    %196 = vmatprep.subr.mxu0 0.0
    %197 = vmatpush1.msra.mxu0 0.0
    %198 = vmatprep.subr.mxu0 0.0
    %199 = vmatpush1.msra.mxu0 0.0
    %200 = vmatprep.subr.mxu0 0.0
    %201 = vmatpush1.msra.mxu0 0.0
    %202 = vmatprep.subr.mxu0 0.0
    %203 = vmatpush1.msra.mxu0 0.0
    %204 = vmatprep.subr.mxu0 0.0
    %205 = vmatpush1.msra.mxu0 0.0
    %206 = vmatprep.subr.mxu0 0.0
    %207 = vmatpush1.msra.mxu0 0.0
    %208 = vmatprep.subr.mxu0 0.0
    %209 = vmatpush1.msra.mxu0 0.0
    %210 = vmatprep.subr.mxu0 0.0
    %211 = vmatpush1.msra.mxu0 0.0
    %212 = vmatprep.subr.mxu0 0.0
    %213 = vmatpush1.msra.mxu0 0.0
    %214 = vmatprep.subr.mxu0 0.0
    %215 = vmatpush1.msra.mxu0 0.0
    %216 = vmatprep.subr.mxu0 0.0
    %217 = vmatpush1.msra.mxu0 0.0
    %218 = vmatprep.subr.mxu0 0.0
    %219 = vmatpush1.msra.mxu0 0.0
    %220 = vmatprep.subr.mxu0 0.0
    %221 = vmatpush1.msra.mxu0 0.0
    %222 = vmatprep.mubr.f32.mxu0 0.0
    %223 = vmatmul.mubr.f32.gmra.mrb[0].mxu0 %v138
    %v224 = vpop.f32.mrb[0].mxu0
    %v225 = vadd.f32 0.0, %v224
    %v226 = vpop.f32.mrb[0].mxu0
    %227 = vmatprep.mubr.f32.mxu0 0.0
    %228 = vmatmul.mubr.f32.gmra.mrb[0].mxu0 %v139
    %v229 = vpop.f32.mrb[0].mxu0
    %v230 = vadd.f32 0.0, %v229
    %v231 = vpop.f32.mrb[0].mxu0
    %232 = vdwg.mxu0
    %v233 = vadd.f32 %v140, %v225
    %v234 = vadd.f32 %v141, %v230
    %235 = vst.msk [vmem:[#allocation2] sm:$0xff] %vm48, %v233
    %236 = vst.msk [vmem:[#allocation2 + $0x8] sm:$0xff] %vm48, %v234
    // Predicated region
    $region26: #{_mpt_mlp_jit.1} parent=1 // pred_check
      _
    $region27: #{_mpt_mlp_jit.1} parent=1 // pred_check_branch
      %238 = sbr.rel (0) target = $region29
    $region28: #{_mpt_mlp_jit.1} parent=1 // pred_region
      %s240 = ssub.s32 256, 256
      %241 = vsyncadd [#allocation3], %s240
      %s242 = sshll.u32 [#allocation2], 4
      %s243 = int_to_ptr.vmem [resolvable:$true] %s242
      %248 = dma.vmem_to_hbm [thread:$0]  %s243, 256, %s5, [#allocation3], 128, 128, 8
    $region29: #{_mpt_mlp_jit.1} parent=1 // pred_fallthru
      _
    // Predicated region
    $region30: #{_mpt_mlp_jit.1} parent=1 // pred_check
      _
    $region31: #{_mpt_mlp_jit.1} parent=1 // pred_check_branch
      %250 = sbr.rel (0) target = $region33
    $region32: #{_mpt_mlp_jit.1} parent=1 // pred_region
      %251 = dma.done [#allocation3], 256
    $region33: #{_mpt_mlp_jit.1} parent=1 // pred_fallthru
      _
    %252 = vsyncpa [#allocation3], 1

</llo_original>
